<compile_context>
chip_gen: v5e
topology: v5e:2x2
jax: 0.10.0
libtpu: 0.0.40
codegen_flags: <defaults>
</compile_context>

<pallas_src>
import jax
import jax.numpy as jnp
from jax import lax
from jax.experimental import pallas as pl
from jax.experimental.pallas import tpu as pltpu


HIDDEN_SIZE = 768      # config.hidden_size in the module
EMBEDDING_SIZE = 64    # embedding_size in the module
SEQ_LEN = 49           # Swin-tiny last stage: 7x7 tokens
BATCH = 2


def _pool_embed_kernel(h_ref, w_ref, b_ref, o_ref):
    """Fused mean-over-L + Linear(H->E) + bias, all in f32."""
    # f32 sum over the sequence (sublane) axis; hidden under the HBM DMA.
    pooled_sum = jnp.sum(h_ref[...], axis=1)                 # (Bt, H) f32
    out = jnp.dot(pooled_sum, w_ref[...],
                  preferred_element_type=jnp.float32)        # (Bt, E) f32
    inv_l = 1.0 / h_ref.shape[1]                             # static scalar
    # Apply 1/L on the small (Bt, E) tile instead of the (Bt, H) pooled slab.
    o_ref[...] = out * inv_l + b_ref[...]


def _round_up(x, m):
    return ((x + m - 1) // m) * m


def _vmem_capacity_bytes():
    """Physical VMEM of the current chip; conservative fallback if unknown."""
    try:
        info = pltpu.get_tpu_info()
        cap = getattr(info, "vmem_capacity_bytes", None)
        if cap:
            return int(cap)
    except Exception:
        pass
    return 64 << 20   # v7x-sized fallback (smallest current generation)


def _select_batch_tile(batch, seq_len, hidden, itemsize, vmem_bytes):
    """Largest batch tile whose *padded*, double-buffered hidden-state block
    fits in ~60% of this generation's physical VMEM.

    A (bt, L, H) f32 block pads L=49 up to 56 sublanes, so one buffer is
    bt * 56 * 768 * 4 bytes and double-buffering doubles that.  The ~40%
    headroom covers the (double-buffered) weight/bias/output blocks and
    compiler scratch.  Resulting caps: v7x (64 MiB) -> bt=64,
    v5e / v6e (128 MiB) -> bt=128.
    """
    padded_l = _round_up(seq_len, 8)                  # f32 sublane tiling
    row_bytes = padded_l * hidden * itemsize          # one batch row, one buffer
    budget = int(vmem_bytes * 0.6)
    cap = max(8, budget // (2 * row_bytes))           # double-buffered
    if batch <= cap:
        return batch                                  # single block, grid=(1,)
    for bt in (256, 128, 64, 32, 16, 8):              # multiples of 8 so the
        if bt <= cap:                                 # (bt, E) out block tiles
            return bt
    return 8


def pool_and_embed(hidden_states, w_embed, b_embed):
    """hidden_states: (B, L, H) f32; w_embed: (H, E); b_embed: (1, E) -> (B, E) f32."""
    B, L, H = hidden_states.shape
    E = w_embed.shape[1]

    h_f32 = hidden_states.astype(jnp.float32)
    w_f32 = w_embed.astype(jnp.float32)
    b_f32 = b_embed.astype(jnp.float32)
    itemsize = jnp.dtype(jnp.float32).itemsize

    vmem_bytes = _vmem_capacity_bytes()
    bt = _select_batch_tile(B, L, H, itemsize, vmem_bytes)
    grid = (pl.cdiv(B, bt),)

    # Scoped-VMEM limit sized from the padded tile actually chosen (v5e's
    # 16 MiB default would otherwise reject the larger tiles), with margin for
    # weight/bias/output buffers and compiler scratch.
    padded_l = _round_up(L, 8)
    needed = (2 * bt * padded_l * H * itemsize                       # input x2
              + 2 * _round_up(H, 8) * _round_up(E, 128) * itemsize   # weight x2
              + (8 << 20))                                           # margin
    vmem_limit = max(32 << 20, min(int(vmem_bytes * 0.9), needed))

    return pl.pallas_call(
        _pool_embed_kernel,
        out_shape=jax.ShapeDtypeStruct((B, E), jnp.float32),
        grid=grid,
        in_specs=[
            pl.BlockSpec((bt, L, H), lambda b: (b, 0, 0)),   # hidden-state tile
            pl.BlockSpec((H, E), lambda b: (0, 0)),          # embedding weight
            pl.BlockSpec((1, E), lambda b: (0, 0)),          # embedding bias
        ],
        out_specs=pl.BlockSpec((bt, E), lambda b: (b, 0)),
        compiler_params=pltpu.CompilerParams(
            dimension_semantics=("parallel",),               # megacore on v7x
            allow_input_fusion=[True, True, True],           # fuse producer in
            vmem_limit_bytes=vmem_limit,
        ),
    )(h_f32, w_f32, b_f32)


def _reference(h, w, b):
    """Pure f32 reference of pooler + Linear (true module semantics)."""
    pooled = jnp.mean(h.astype(jnp.float32), axis=1)
    return jnp.dot(pooled, w.astype(jnp.float32),
                   precision=lax.Precision.HIGHEST) + b.astype(jnp.float32)


if __name__ == "__main__":
    key = jax.random.PRNGKey(0)
    k_h, k_w, k_b = jax.random.split(key, 3)

    # Synthetic "backbone hidden_states[-1]" activations: (B, L, H)
    hidden_states = jax.random.normal(k_h, (BATCH, SEQ_LEN, HIDDEN_SIZE),
                                      dtype=jnp.float32)

    # Deterministic nn.Linear(768 -> 64) style init: U(-1/sqrt(H), 1/sqrt(H))
    bound = 1.0 / (HIDDEN_SIZE ** 0.5)
    w_embed = jax.random.uniform(k_w, (HIDDEN_SIZE, EMBEDDING_SIZE),
                                 minval=-bound, maxval=bound, dtype=jnp.float32)
    b_embed = jax.random.uniform(k_b, (1, EMBEDDING_SIZE),
                                 minval=-bound, maxval=bound, dtype=jnp.float32)

    out = pool_and_embed(hidden_states, w_embed, b_embed)
    out = jax.block_until_ready(out)

    ref = _reference(hidden_states, w_embed, b_embed)
    assert out.shape == (BATCH, EMBEDDING_SIZE), out.shape
    # All-f32 path (f32 stream, f32-accumulated MXU matmul) vs f32 reference.
    assert jnp.allclose(out, ref, atol=5e-3, rtol=5e-3), "mismatch vs JAX reference"

    print("KERNEL_OK")
</pallas_src>

<mosaic_0001>
module attributes {stable_mosaic.version = 11 : i64} {
  func.func @_pool_embed_kernel(%arg0: i32, %arg1: memref<2x49x768xf32, #tpu.memory_space<vmem>>, %arg2: memref<768x64xf32, #tpu.memory_space<vmem>>, %arg3: memref<1x64xf32, #tpu.memory_space<vmem>>, %arg4: memref<2x64xf32, #tpu.memory_space<vmem>>) attributes {dimension_semantics = [#tpu.dimension_semantics<parallel>], iteration_bounds = array<i64: 1>, scalar_prefetch = 0 : i64, scratch_operands = 0 : i64, tpu.core_type = #tpu.core_type<tc>, window_params = [{transform_indices = @transform_0, window_bounds = array<i64: 2, 49, 768>}, {pipeline_mode = #tpu.pipeline_mode<synchronous>, transform_indices = @transform_1, window_bounds = array<i64: 768, 64>}, {pipeline_mode = #tpu.pipeline_mode<synchronous>, transform_indices = @transform_2, window_bounds = array<i64: 1, 64>}, {transform_indices = @transform_3, window_bounds = array<i64: 2, 64>}]} {
    %c0 = arith.constant 0 : index
    %c0_0 = arith.constant 0 : index
    %c0_1 = arith.constant 0 : index
    %0 = vector.load %arg1[%c0, %c0_0, %c0_1] : memref<2x49x768xf32, #tpu.memory_space<vmem>>, vector<2x49x768xf32>
    %cst = arith.constant dense<0.000000e+00> : vector<2x768xf32>
    %1 = vector.multi_reduction <add>, %0, %cst [1] : vector<2x49x768xf32> to vector<2x768xf32>
    %c0_2 = arith.constant 0 : index
    %c0_3 = arith.constant 0 : index
    %2 = vector.load %arg2[%c0_2, %c0_3] : memref<768x64xf32, #tpu.memory_space<vmem>>, vector<768x64xf32>
    %cst_4 = arith.constant dense<0.000000e+00> : vector<2x64xf32>
    %3 = tpu.matmul %1, %2, %cst_4 {dimension_numbers = #tpu.dot_dimension_numbers<[1], [0], [0], [1], [0, 0, 1, 1], [], []>} : vector<2x768xf32>, vector<768x64xf32>, vector<2x64xf32> -> vector<2x64xf32>
    %cst_5 = arith.constant 0.0204081628 : f32
    %4 = vector.broadcast %cst_5 : f32 to vector<2x64xf32>
    %5 = arith.mulf %3, %4 : vector<2x64xf32>
    %c0_6 = arith.constant 0 : index
    %c0_7 = arith.constant 0 : index
    %6 = vector.load %arg3[%c0_6, %c0_7] : memref<1x64xf32, #tpu.memory_space<vmem>>, vector<1x64xf32>
    %7 = vector.broadcast %6 : vector<1x64xf32> to vector<2x64xf32>
    %8 = arith.addf %5, %7 : vector<2x64xf32>
    %c0_8 = arith.constant 0 : index
    %c0_9 = arith.constant 0 : index
    %9 = vector.load %arg4[%c0_8, %c0_9] : memref<2x64xf32, #tpu.memory_space<vmem>>, vector<2x64xf32>
    tpu.vector_store %arg4[%c0_8, %c0_9], %8 {strides = array<i32>} : memref<2x64xf32, #tpu.memory_space<vmem>>, vector<2x64xf32>,
    return
  }
  func.func @transform_0(%arg0: i32) -> (i32, i32, i32) {
    %c0_i32 = arith.constant 0 : i32
    %c0_i32_0 = arith.constant 0 : i32
    %c0_i32_1 = arith.constant 0 : i32
    return %arg0, %c0_i32, %c0_i32_0 : i32, i32, i32
  }
  func.func @transform_1(%arg0: i32) -> (i32, i32) {
    %c0_i32 = arith.constant 0 : i32
    %c0_i32_0 = arith.constant 0 : i32
    %c0_i32_1 = arith.constant 0 : i32
    return %c0_i32, %c0_i32_0 : i32, i32
  }
  func.func @transform_2(%arg0: i32) -> (i32, i32) {
    %c0_i32 = arith.constant 0 : i32
    %c0_i32_0 = arith.constant 0 : i32
    %c0_i32_1 = arith.constant 0 : i32
    return %c0_i32, %c0_i32_0 : i32, i32
  }
  func.func @transform_3(%arg0: i32) -> (i32, i32) {
    %c0_i32 = arith.constant 0 : i32
    %c0_i32_0 = arith.constant 0 : i32
    return %arg0, %c0_i32 : i32, i32
  }
}

</mosaic_0001>

<llo_original>
// kernel: tpu_custom_call.1
$region0: #{tpu_custom_call.1}
  #allocation0 [shape = 'u32[]', space=smem, size = 0x4, offset = 0x4, fixed_abs, tag = 'smem constant byte address 0x4 - core index']
  #allocation1 [shape = 'u32[72,128]{1,0:T(1,128)}', space=vmem, size = 0x9000, scoped, tag = 'internal scratch']
  %s0 = inlined_call_operand.vmem [shape: f32[2,49,768], index: 0, kind: input, shape index: {}]
  %s1 = inlined_call_operand.vmem [shape: f32[768,64], index: 1, kind: input, shape index: {}]
  %s2 = inlined_call_operand.vmem [shape: f32[1,64], index: 2, kind: input, shape index: {}]
  %s3 = inlined_call_operand.hbm [shape: f32[2,64], index: 3, kind: output, shape index: {}]
  %s4 = sld [smem:[#allocation0]]
  $region22: #{tpu_custom_call.1} parent=0
    _
  %s6 = ssub.s32 1, %s4
  %s7 = scalar_select 0, %s6, %s4
  $region1: #{tpu_custom_call.1} parent=0
    #allocation2 [shape = 'u8[1024]{0}', space=vmem, size = 0x400, scoped, tag = 'output window, operand 0, single buffered']
    #allocation3 [shape = 's32[1]{0}', space=sflag, size = 0x4, scoped, tag = 'scoped memory for tpu_custom_call.1']
    %8 = vsyncpa [#allocation3], 0
    // Predicated region
    $region2: #{tpu_custom_call.1} parent=1 // pred_check
      _
    $region3: #{tpu_custom_call.1} parent=1 // pred_check_branch
      %10 = sbr.rel (0) target = $region5
    $region4: #{tpu_custom_call.1} parent=1 // pred_region
      _
    $region5: #{tpu_custom_call.1} parent=1 // pred_fallthru
      _
    // Predicated region
    $region6: #{tpu_custom_call.1} parent=1 // pred_check
      _
    $region7: #{tpu_custom_call.1} parent=1 // pred_check_branch
      %12 = sbr.rel (0) target = $region9
    $region8: #{tpu_custom_call.1} parent=1 // pred_region
      _
    $region9: #{tpu_custom_call.1} parent=1 // pred_fallthru
      _
    // Predicated region
    $region10: #{tpu_custom_call.1} parent=1 // pred_check
      _
    $region11: #{tpu_custom_call.1} parent=1 // pred_check_branch
      %14 = sbr.rel (0) target = $region13
    $region12: #{tpu_custom_call.1} parent=1 // pred_region
      _
    $region13: #{tpu_custom_call.1} parent=1 // pred_fallthru
      _
    %v15 = vld [vmem:[%s0] sm:$0xff]
    %v16 = vld [vmem:[%s0 + $0x8] sm:$0xff]
    %v17 = vld [vmem:[%s0 + $0x10] sm:$0xff]
    %v18 = vld [vmem:[%s0 + $0x18] sm:$0xff]
    %v19 = vld [vmem:[%s0 + $0x20] sm:$0xff]
    %v20 = vld [vmem:[%s0 + $0x28] sm:$0xff]
    %v21 = vld [vmem:[%s0 + $0x30] sm:$0xff]
    %v22 = vld [vmem:[%s0 + $0x38] sm:$0xff]
    %v23 = vld [vmem:[%s0 + $0x40] sm:$0xff]
    %v24 = vld [vmem:[%s0 + $0x48] sm:$0xff]
    %v25 = vld [vmem:[%s0 + $0x50] sm:$0xff]
    %v26 = vld [vmem:[%s0 + $0x58] sm:$0xff]
    %v27 = vld [vmem:[%s0 + $0x60] sm:$0xff]
    %v28 = vld [vmem:[%s0 + $0x68] sm:$0xff]
    %v29 = vld [vmem:[%s0 + $0x70] sm:$0xff]
    %v30 = vld [vmem:[%s0 + $0x78] sm:$0xff]
    %v31 = vld [vmem:[%s0 + $0x80] sm:$0xff]
    %v32 = vld [vmem:[%s0 + $0x88] sm:$0xff]
    %v33 = vld [vmem:[%s0 + $0x90] sm:$0xff]
    %v34 = vld [vmem:[%s0 + $0x98] sm:$0xff]
    %v35 = vld [vmem:[%s0 + $0xa0] sm:$0xff]
    %v36 = vld [vmem:[%s0 + $0xa8] sm:$0xff]
    %v37 = vld [vmem:[%s0 + $0xb0] sm:$0xff]
    %v38 = vld [vmem:[%s0 + $0xb8] sm:$0xff]
    %v39 = vld [vmem:[%s0 + $0xc0] sm:$0xff]
    %v40 = vld [vmem:[%s0 + $0xc8] sm:$0xff]
    %v41 = vld [vmem:[%s0 + $0xd0] sm:$0xff]
    %v42 = vld [vmem:[%s0 + $0xd8] sm:$0xff]
    %v43 = vld [vmem:[%s0 + $0xe0] sm:$0xff]
    %v44 = vld [vmem:[%s0 + $0xe8] sm:$0xff]
    %v45 = vld [vmem:[%s0 + $0xf0] sm:$0xff]
    %v46 = vld [vmem:[%s0 + $0xf8] sm:$0xff]
    %v47 = vld [vmem:[%s0 + $0x100] sm:$0xff]
    %v48 = vld [vmem:[%s0 + $0x108] sm:$0xff]
    %v49 = vld [vmem:[%s0 + $0x110] sm:$0xff]
    %v50 = vld [vmem:[%s0 + $0x118] sm:$0xff]
    %v51 = vld [vmem:[%s0 + $0x120] sm:$0x1]
    %v52 = vld [vmem:[%s0 + $0x128] sm:$0x1]
    %v53 = vld [vmem:[%s0 + $0x130] sm:$0x1]
    %v54 = vld [vmem:[%s0 + $0x138] sm:$0x1]
    %v55 = vld [vmem:[%s0 + $0x140] sm:$0x1]
    %v56 = vld [vmem:[%s0 + $0x148] sm:$0x1]
    %v57 = vld [vmem:[%s0 + $0x150] sm:$0xff]
    %v58 = vld [vmem:[%s0 + $0x158] sm:$0xff]
    %v59 = vld [vmem:[%s0 + $0x160] sm:$0xff]
    %v60 = vld [vmem:[%s0 + $0x168] sm:$0xff]
    %v61 = vld [vmem:[%s0 + $0x170] sm:$0xff]
    %v62 = vld [vmem:[%s0 + $0x178] sm:$0xff]
    %v63 = vld [vmem:[%s0 + $0x180] sm:$0xff]
    %v64 = vld [vmem:[%s0 + $0x188] sm:$0xff]
    %v65 = vld [vmem:[%s0 + $0x190] sm:$0xff]
    %v66 = vld [vmem:[%s0 + $0x198] sm:$0xff]
    %v67 = vld [vmem:[%s0 + $0x1a0] sm:$0xff]
    %v68 = vld [vmem:[%s0 + $0x1a8] sm:$0xff]
    %v69 = vld [vmem:[%s0 + $0x1b0] sm:$0xff]
    %v70 = vld [vmem:[%s0 + $0x1b8] sm:$0xff]
    %v71 = vld [vmem:[%s0 + $0x1c0] sm:$0xff]
    %v72 = vld [vmem:[%s0 + $0x1c8] sm:$0xff]
    %v73 = vld [vmem:[%s0 + $0x1d0] sm:$0xff]
    %v74 = vld [vmem:[%s0 + $0x1d8] sm:$0xff]
    %v75 = vld [vmem:[%s0 + $0x1e0] sm:$0xff]
    %v76 = vld [vmem:[%s0 + $0x1e8] sm:$0xff]
    %v77 = vld [vmem:[%s0 + $0x1f0] sm:$0xff]
    %v78 = vld [vmem:[%s0 + $0x1f8] sm:$0xff]
    %v79 = vld [vmem:[%s0 + $0x200] sm:$0xff]
    %v80 = vld [vmem:[%s0 + $0x208] sm:$0xff]
    %v81 = vld [vmem:[%s0 + $0x210] sm:$0xff]
    %v82 = vld [vmem:[%s0 + $0x218] sm:$0xff]
    %v83 = vld [vmem:[%s0 + $0x220] sm:$0xff]
    %v84 = vld [vmem:[%s0 + $0x228] sm:$0xff]
    %v85 = vld [vmem:[%s0 + $0x230] sm:$0xff]
    %v86 = vld [vmem:[%s0 + $0x238] sm:$0xff]
    %v87 = vld [vmem:[%s0 + $0x240] sm:$0xff]
    %v88 = vld [vmem:[%s0 + $0x248] sm:$0xff]
    %v89 = vld [vmem:[%s0 + $0x250] sm:$0xff]
    %v90 = vld [vmem:[%s0 + $0x258] sm:$0xff]
    %v91 = vld [vmem:[%s0 + $0x260] sm:$0xff]
    %v92 = vld [vmem:[%s0 + $0x268] sm:$0xff]
    %v93 = vld [vmem:[%s0 + $0x270] sm:$0x1]
    %v94 = vld [vmem:[%s0 + $0x278] sm:$0x1]
    %v95 = vld [vmem:[%s0 + $0x280] sm:$0x1]
    %v96 = vld [vmem:[%s0 + $0x288] sm:$0x1]
    %v97 = vld [vmem:[%s0 + $0x290] sm:$0x1]
    %v98 = vld [vmem:[%s0 + $0x298] sm:$0x1]
    %v99 = vadd.f32 %v15, %v21
    %v100 = vadd.f32 %v99, %v27
    %v101 = vadd.f32 %v100, %v33
    %v102 = vadd.f32 %v101, %v39
    %v103 = vadd.f32 %v102, %v45
    %vm104 = vcmask 1040384
    %v105 = vsel %vm104, %v51, 0.0
    %v106 = vadd.f32 %v103, %v105
    %v107 = vrot.slane %v106, 4
    %v108 = vadd.f32 %v106, %v107
    %v109 = vrot.slane %v108, 2
    %v110 = vadd.f32 %v108, %v109
    %v111 = vrot.slane %v110, 1
    %v112 = vadd.f32 %v110, %v111
    %v113 = vadd.f32 %v16, %v22
    %v114 = vadd.f32 %v113, %v28
    %v115 = vadd.f32 %v114, %v34
    %v116 = vadd.f32 %v115, %v40
    %v117 = vadd.f32 %v116, %v46
    %v118 = vsel %vm104, %v52, 0.0
    %v119 = vadd.f32 %v117, %v118
    %v120 = vrot.slane %v119, 4
    %v121 = vadd.f32 %v119, %v120
    %v122 = vrot.slane %v121, 2
    %v123 = vadd.f32 %v121, %v122
    %v124 = vrot.slane %v123, 1
    %v125 = vadd.f32 %v123, %v124
    %v126 = vadd.f32 %v17, %v23
    %v127 = vadd.f32 %v126, %v29
    %v128 = vadd.f32 %v127, %v35
    %v129 = vadd.f32 %v128, %v41
    %v130 = vadd.f32 %v129, %v47
    %v131 = vsel %vm104, %v53, 0.0
    %v132 = vadd.f32 %v130, %v131
    %v133 = vrot.slane %v132, 4
    %v134 = vadd.f32 %v132, %v133
    %v135 = vrot.slane %v134, 2
    %v136 = vadd.f32 %v134, %v135
    %v137 = vrot.slane %v136, 1
    %v138 = vadd.f32 %v136, %v137
    %v139 = vadd.f32 %v18, %v24
    %v140 = vadd.f32 %v139, %v30
    %v141 = vadd.f32 %v140, %v36
    %v142 = vadd.f32 %v141, %v42
    %v143 = vadd.f32 %v142, %v48
    %v144 = vsel %vm104, %v54, 0.0
    %v145 = vadd.f32 %v143, %v144
    %v146 = vrot.slane %v145, 4
    %v147 = vadd.f32 %v145, %v146
    %v148 = vrot.slane %v147, 2
    %v149 = vadd.f32 %v147, %v148
    %v150 = vrot.slane %v149, 1
    %v151 = vadd.f32 %v149, %v150
    %v152 = vadd.f32 %v19, %v25
    %v153 = vadd.f32 %v152, %v31
    %v154 = vadd.f32 %v153, %v37
    %v155 = vadd.f32 %v154, %v43
    %v156 = vadd.f32 %v155, %v49
    %v157 = vsel %vm104, %v55, 0.0
    %v158 = vadd.f32 %v156, %v157
    %v159 = vrot.slane %v158, 4
    %v160 = vadd.f32 %v158, %v159
    %v161 = vrot.slane %v160, 2
    %v162 = vadd.f32 %v160, %v161
    %v163 = vrot.slane %v162, 1
    %v164 = vadd.f32 %v162, %v163
    %v165 = vadd.f32 %v20, %v26
    %v166 = vadd.f32 %v165, %v32
    %v167 = vadd.f32 %v166, %v38
    %v168 = vadd.f32 %v167, %v44
    %v169 = vadd.f32 %v168, %v50
    %v170 = vsel %vm104, %v56, 0.0
    %v171 = vadd.f32 %v169, %v170
    %v172 = vrot.slane %v171, 4
    %v173 = vadd.f32 %v171, %v172
    %v174 = vrot.slane %v173, 2
    %v175 = vadd.f32 %v173, %v174
    %v176 = vrot.slane %v175, 1
    %v177 = vadd.f32 %v175, %v176
    %v178 = vadd.f32 %v57, %v63
    %v179 = vadd.f32 %v178, %v69
    %v180 = vadd.f32 %v179, %v75
    %v181 = vadd.f32 %v180, %v81
    %v182 = vadd.f32 %v181, %v87
    %v183 = vsel %vm104, %v93, 0.0
    %v184 = vadd.f32 %v182, %v183
    %v185 = vrot.slane %v184, 4
    %v186 = vadd.f32 %v184, %v185
    %v187 = vrot.slane %v186, 2
    %v188 = vadd.f32 %v186, %v187
    %v189 = vrot.slane %v188, 1
    %v190 = vadd.f32 %v188, %v189
    %v191 = vadd.f32 %v58, %v64
    %v192 = vadd.f32 %v191, %v70
    %v193 = vadd.f32 %v192, %v76
    %v194 = vadd.f32 %v193, %v82
    %v195 = vadd.f32 %v194, %v88
    %v196 = vsel %vm104, %v94, 0.0
    %v197 = vadd.f32 %v195, %v196
    %v198 = vrot.slane %v197, 4
    %v199 = vadd.f32 %v197, %v198
    %v200 = vrot.slane %v199, 2
    %v201 = vadd.f32 %v199, %v200
    %v202 = vrot.slane %v201, 1
    %v203 = vadd.f32 %v201, %v202
    %v204 = vadd.f32 %v59, %v65
    %v205 = vadd.f32 %v204, %v71
    %v206 = vadd.f32 %v205, %v77
    %v207 = vadd.f32 %v206, %v83
    %v208 = vadd.f32 %v207, %v89
    %v209 = vsel %vm104, %v95, 0.0
    %v210 = vadd.f32 %v208, %v209
    %v211 = vrot.slane %v210, 4
    %v212 = vadd.f32 %v210, %v211
    %v213 = vrot.slane %v212, 2
    %v214 = vadd.f32 %v212, %v213
    %v215 = vrot.slane %v214, 1
    %v216 = vadd.f32 %v214, %v215
    %v217 = vadd.f32 %v60, %v66
    %v218 = vadd.f32 %v217, %v72
    %v219 = vadd.f32 %v218, %v78
    %v220 = vadd.f32 %v219, %v84
    %v221 = vadd.f32 %v220, %v90
    %v222 = vsel %vm104, %v96, 0.0
    %v223 = vadd.f32 %v221, %v222
    %v224 = vrot.slane %v223, 4
    %v225 = vadd.f32 %v223, %v224
    %v226 = vrot.slane %v225, 2
    %v227 = vadd.f32 %v225, %v226
    %v228 = vrot.slane %v227, 1
    %v229 = vadd.f32 %v227, %v228
    %v230 = vadd.f32 %v61, %v67
    %v231 = vadd.f32 %v230, %v73
    %v232 = vadd.f32 %v231, %v79
    %v233 = vadd.f32 %v232, %v85
    %v234 = vadd.f32 %v233, %v91
    %v235 = vsel %vm104, %v97, 0.0
    %v236 = vadd.f32 %v234, %v235
    %v237 = vrot.slane %v236, 4
    %v238 = vadd.f32 %v236, %v237
    %v239 = vrot.slane %v238, 2
    %v240 = vadd.f32 %v238, %v239
    %v241 = vrot.slane %v240, 1
    %v242 = vadd.f32 %v240, %v241
    %v243 = vadd.f32 %v62, %v68
    %v244 = vadd.f32 %v243, %v74
    %v245 = vadd.f32 %v244, %v80
    %v246 = vadd.f32 %v245, %v86
    %v247 = vadd.f32 %v246, %v92
    %v248 = vsel %vm104, %v98, 0.0
    %v249 = vadd.f32 %v247, %v248
    %v250 = vrot.slane %v249, 4
    %v251 = vadd.f32 %v249, %v250
    %v252 = vrot.slane %v251, 2
    %v253 = vadd.f32 %v251, %v252
    %v254 = vrot.slane %v253, 1
    %v255 = vadd.f32 %v253, %v254
    %v256 = vld [vmem:[%s1] sm:$0xff]
    %v257 = vld [vmem:[%s1 + $0x8] sm:$0xff]
    %v258 = vld [vmem:[%s1 + $0x10] sm:$0xff]
    %v259 = vld [vmem:[%s1 + $0x18] sm:$0xff]
    %v260 = vld [vmem:[%s1 + $0x20] sm:$0xff]
    %v261 = vld [vmem:[%s1 + $0x28] sm:$0xff]
    %v262 = vld [vmem:[%s1 + $0x30] sm:$0xff]
    %v263 = vld [vmem:[%s1 + $0x38] sm:$0xff]
    %v264 = vld [vmem:[%s1 + $0x40] sm:$0xff]
    %v265 = vld [vmem:[%s1 + $0x48] sm:$0xff]
    %v266 = vld [vmem:[%s1 + $0x50] sm:$0xff]
    %v267 = vld [vmem:[%s1 + $0x58] sm:$0xff]
    %v268 = vld [vmem:[%s1 + $0x60] sm:$0xff]
    %v269 = vld [vmem:[%s1 + $0x68] sm:$0xff]
    %v270 = vld [vmem:[%s1 + $0x70] sm:$0xff]
    %v271 = vld [vmem:[%s1 + $0x78] sm:$0xff]
    %v272 = vld [vmem:[%s1 + $0x80] sm:$0xff]
    %v273 = vld [vmem:[%s1 + $0x88] sm:$0xff]
    %v274 = vld [vmem:[%s1 + $0x90] sm:$0xff]
    %v275 = vld [vmem:[%s1 + $0x98] sm:$0xff]
    %v276 = vld [vmem:[%s1 + $0xa0] sm:$0xff]
    %v277 = vld [vmem:[%s1 + $0xa8] sm:$0xff]
    %v278 = vld [vmem:[%s1 + $0xb0] sm:$0xff]
    %v279 = vld [vmem:[%s1 + $0xb8] sm:$0xff]
    %v280 = vld [vmem:[%s1 + $0xc0] sm:$0xff]
    %v281 = vld [vmem:[%s1 + $0xc8] sm:$0xff]
    %v282 = vld [vmem:[%s1 + $0xd0] sm:$0xff]
    %v283 = vld [vmem:[%s1 + $0xd8] sm:$0xff]
    %v284 = vld [vmem:[%s1 + $0xe0] sm:$0xff]
    %v285 = vld [vmem:[%s1 + $0xe8] sm:$0xff]
    %v286 = vld [vmem:[%s1 + $0xf0] sm:$0xff]
    %v287 = vld [vmem:[%s1 + $0xf8] sm:$0xff]
    %v288 = vld [vmem:[%s1 + $0x100] sm:$0xff]
    %v289 = vld [vmem:[%s1 + $0x108] sm:$0xff]
    %v290 = vld [vmem:[%s1 + $0x110] sm:$0xff]
    %v291 = vld [vmem:[%s1 + $0x118] sm:$0xff]
    %v292 = vld [vmem:[%s1 + $0x120] sm:$0xff]
    %v293 = vld [vmem:[%s1 + $0x128] sm:$0xff]
    %v294 = vld [vmem:[%s1 + $0x130] sm:$0xff]
    %v295 = vld [vmem:[%s1 + $0x138] sm:$0xff]
    %v296 = vld [vmem:[%s1 + $0x140] sm:$0xff]
    %v297 = vld [vmem:[%s1 + $0x148] sm:$0xff]
    %v298 = vld [vmem:[%s1 + $0x150] sm:$0xff]
    %v299 = vld [vmem:[%s1 + $0x158] sm:$0xff]
    %v300 = vld [vmem:[%s1 + $0x160] sm:$0xff]
    %v301 = vld [vmem:[%s1 + $0x168] sm:$0xff]
    %v302 = vld [vmem:[%s1 + $0x170] sm:$0xff]
    %v303 = vld [vmem:[%s1 + $0x178] sm:$0xff]
    %v304 = vld [vmem:[%s1 + $0x180] sm:$0xff]
    %v305 = vld [vmem:[%s1 + $0x188] sm:$0xff]
    %v306 = vld [vmem:[%s1 + $0x190] sm:$0xff]
    %v307 = vld [vmem:[%s1 + $0x198] sm:$0xff]
    %v308 = vld [vmem:[%s1 + $0x1a0] sm:$0xff]
    %v309 = vld [vmem:[%s1 + $0x1a8] sm:$0xff]
    %v310 = vld [vmem:[%s1 + $0x1b0] sm:$0xff]
    %v311 = vld [vmem:[%s1 + $0x1b8] sm:$0xff]
    %v312 = vld [vmem:[%s1 + $0x1c0] sm:$0xff]
    %v313 = vld [vmem:[%s1 + $0x1c8] sm:$0xff]
    %v314 = vld [vmem:[%s1 + $0x1d0] sm:$0xff]
    %v315 = vld [vmem:[%s1 + $0x1d8] sm:$0xff]
    %v316 = vld [vmem:[%s1 + $0x1e0] sm:$0xff]
    %v317 = vld [vmem:[%s1 + $0x1e8] sm:$0xff]
    %v318 = vld [vmem:[%s1 + $0x1f0] sm:$0xff]
    %v319 = vld [vmem:[%s1 + $0x1f8] sm:$0xff]
    %v320 = vld [vmem:[%s1 + $0x200] sm:$0xff]
    %v321 = vld [vmem:[%s1 + $0x208] sm:$0xff]
    %v322 = vld [vmem:[%s1 + $0x210] sm:$0xff]
    %v323 = vld [vmem:[%s1 + $0x218] sm:$0xff]
    %v324 = vld [vmem:[%s1 + $0x220] sm:$0xff]
    %v325 = vld [vmem:[%s1 + $0x228] sm:$0xff]
    %v326 = vld [vmem:[%s1 + $0x230] sm:$0xff]
    %v327 = vld [vmem:[%s1 + $0x238] sm:$0xff]
    %v328 = vld [vmem:[%s1 + $0x240] sm:$0xff]
    %v329 = vld [vmem:[%s1 + $0x248] sm:$0xff]
    %v330 = vld [vmem:[%s1 + $0x250] sm:$0xff]
    %v331 = vld [vmem:[%s1 + $0x258] sm:$0xff]
    %v332 = vld [vmem:[%s1 + $0x260] sm:$0xff]
    %v333 = vld [vmem:[%s1 + $0x268] sm:$0xff]
    %v334 = vld [vmem:[%s1 + $0x270] sm:$0xff]
    %v335 = vld [vmem:[%s1 + $0x278] sm:$0xff]
    %v336 = vld [vmem:[%s1 + $0x280] sm:$0xff]
    %v337 = vld [vmem:[%s1 + $0x288] sm:$0xff]
    %v338 = vld [vmem:[%s1 + $0x290] sm:$0xff]
    %v339 = vld [vmem:[%s1 + $0x298] sm:$0xff]
    %v340 = vld [vmem:[%s1 + $0x2a0] sm:$0xff]
    %v341 = vld [vmem:[%s1 + $0x2a8] sm:$0xff]
    %v342 = vld [vmem:[%s1 + $0x2b0] sm:$0xff]
    %v343 = vld [vmem:[%s1 + $0x2b8] sm:$0xff]
    %v344 = vld [vmem:[%s1 + $0x2c0] sm:$0xff]
    %v345 = vld [vmem:[%s1 + $0x2c8] sm:$0xff]
    %v346 = vld [vmem:[%s1 + $0x2d0] sm:$0xff]
    %v347 = vld [vmem:[%s1 + $0x2d8] sm:$0xff]
    %v348 = vld [vmem:[%s1 + $0x2e0] sm:$0xff]
    %v349 = vld [vmem:[%s1 + $0x2e8] sm:$0xff]
    %v350 = vld [vmem:[%s1 + $0x2f0] sm:$0xff]
    %v351 = vld [vmem:[%s1 + $0x2f8] sm:$0xff]
    %vm364 = vcmask 1041409
    %v365 = vsel %vm364, %v190, %v112
    %v366 = vsel %vm364, %v203, %v125
    %v367 = vsel %vm364, %v216, %v138
    %v368 = vsel %vm364, %v229, %v151
    %v369 = vsel %vm364, %v242, %v164
    %v370 = vsel %vm364, %v255, %v177
    %377 = vmatpush.msra.mxu0 %v271
    %378 = vmatpush.msra.mxu0 %v270
    %379 = vmatpush.msra.mxu0 %v269
    %380 = vmatpush.msra.mxu0 %v268
    %381 = vmatpush.msra.mxu0 %v267
    %382 = vmatpush.msra.mxu0 %v266
    %383 = vmatpush.msra.mxu0 %v265
    %384 = vmatpush.msra.mxu0 %v264
    %385 = vmatpush.msra.mxu0 %v263
    %386 = vmatpush.msra.mxu0 %v262
    %387 = vmatpush.msra.mxu0 %v261
    %388 = vmatpush.msra.mxu0 %v260
    %389 = vmatpush.msra.mxu0 %v259
    %390 = vmatpush.msra.mxu0 %v258
    %391 = vmatpush.msra.mxu0 %v257
    %392 = vmatpush.msra.mxu0 %v256
    %393 = vmatmul.f32.gmra.mxu0 %v365
    %v394 = vpop.f32.mrf.mxu0
    %v395 = vadd.f32 0.0, %v394
    %396 = vdwg.mxu0
    %397 = vmatpush.msra.mxu0 %v287
    %398 = vmatpush.msra.mxu0 %v286
    %399 = vmatpush.msra.mxu0 %v285
    %400 = vmatpush.msra.mxu0 %v284
    %401 = vmatpush.msra.mxu0 %v283
    %402 = vmatpush.msra.mxu0 %v282
    %403 = vmatpush.msra.mxu0 %v281
    %404 = vmatpush.msra.mxu0 %v280
    %405 = vmatpush.msra.mxu0 %v279
    %406 = vmatpush.msra.mxu0 %v278
    %407 = vmatpush.msra.mxu0 %v277
    %408 = vmatpush.msra.mxu0 %v276
    %409 = vmatpush.msra.mxu0 %v275
    %410 = vmatpush.msra.mxu0 %v274
    %411 = vmatpush.msra.mxu0 %v273
    %412 = vmatpush.msra.mxu0 %v272
    %413 = vmatmul.f32.gmra.mxu0 %v366
    %v414 = vpop.f32.mrf.mxu0
    %v415 = vadd.f32 %v395, %v414
    %416 = vdwg.mxu0
    %417 = vmatpush.msra.mxu0 %v303
    %418 = vmatpush.msra.mxu0 %v302
    %419 = vmatpush.msra.mxu0 %v301
    %420 = vmatpush.msra.mxu0 %v300
    %421 = vmatpush.msra.mxu0 %v299
    %422 = vmatpush.msra.mxu0 %v298
    %423 = vmatpush.msra.mxu0 %v297
    %424 = vmatpush.msra.mxu0 %v296
    %425 = vmatpush.msra.mxu0 %v295
    %426 = vmatpush.msra.mxu0 %v294
    %427 = vmatpush.msra.mxu0 %v293
    %428 = vmatpush.msra.mxu0 %v292
    %429 = vmatpush.msra.mxu0 %v291
    %430 = vmatpush.msra.mxu0 %v290
    %431 = vmatpush.msra.mxu0 %v289
    %432 = vmatpush.msra.mxu0 %v288
    %433 = vmatmul.f32.gmra.mxu0 %v367
    %v434 = vpop.f32.mrf.mxu0
    %v435 = vadd.f32 %v415, %v434
    %436 = vdwg.mxu0
    %437 = vmatpush.msra.mxu0 %v319
    %438 = vmatpush.msra.mxu0 %v318
    %439 = vmatpush.msra.mxu0 %v317
    %440 = vmatpush.msra.mxu0 %v316
    %441 = vmatpush.msra.mxu0 %v315
    %442 = vmatpush.msra.mxu0 %v314
    %443 = vmatpush.msra.mxu0 %v313
    %444 = vmatpush.msra.mxu0 %v312
    %445 = vmatpush.msra.mxu0 %v311
    %446 = vmatpush.msra.mxu0 %v310
    %447 = vmatpush.msra.mxu0 %v309
    %448 = vmatpush.msra.mxu0 %v308
    %449 = vmatpush.msra.mxu0 %v307
    %450 = vmatpush.msra.mxu0 %v306
    %451 = vmatpush.msra.mxu0 %v305
    %452 = vmatpush.msra.mxu0 %v304
    %453 = vmatmul.f32.gmra.mxu0 %v368
    %v454 = vpop.f32.mrf.mxu0
    %v455 = vadd.f32 %v435, %v454
    %456 = vdwg.mxu0
    %457 = vmatpush.msra.mxu0 %v335
    %458 = vmatpush.msra.mxu0 %v334
    %459 = vmatpush.msra.mxu0 %v333
    %460 = vmatpush.msra.mxu0 %v332
    %461 = vmatpush.msra.mxu0 %v331
    %462 = vmatpush.msra.mxu0 %v330
    %463 = vmatpush.msra.mxu0 %v329
    %464 = vmatpush.msra.mxu0 %v328
    %465 = vmatpush.msra.mxu0 %v327
    %466 = vmatpush.msra.mxu0 %v326
    %467 = vmatpush.msra.mxu0 %v325
    %468 = vmatpush.msra.mxu0 %v324
    %469 = vmatpush.msra.mxu0 %v323
    %470 = vmatpush.msra.mxu0 %v322
    %471 = vmatpush.msra.mxu0 %v321
    %472 = vmatpush.msra.mxu0 %v320
    %473 = vmatmul.f32.gmra.mxu0 %v369
    %v474 = vpop.f32.mrf.mxu0
    %v475 = vadd.f32 %v455, %v474
    %476 = vdwg.mxu0
    %477 = vmatpush.msra.mxu0 %v351
    %478 = vmatpush.msra.mxu0 %v350
    %479 = vmatpush.msra.mxu0 %v349
    %480 = vmatpush.msra.mxu0 %v348
    %481 = vmatpush.msra.mxu0 %v347
    %482 = vmatpush.msra.mxu0 %v346
    %483 = vmatpush.msra.mxu0 %v345
    %484 = vmatpush.msra.mxu0 %v344
    %485 = vmatpush.msra.mxu0 %v343
    %486 = vmatpush.msra.mxu0 %v342
    %487 = vmatpush.msra.mxu0 %v341
    %488 = vmatpush.msra.mxu0 %v340
    %489 = vmatpush.msra.mxu0 %v339
    %490 = vmatpush.msra.mxu0 %v338
    %491 = vmatpush.msra.mxu0 %v337
    %492 = vmatpush.msra.mxu0 %v336
    %493 = vmatmul.f32.gmra.mxu0 %v370
    %v494 = vpop.f32.mrf.mxu0
    %v495 = vadd.f32 %v475, %v494
    %496 = vdwg.mxu0
    %v497 = vmul.f32 %v495, 0.020408163
    %v498 = vld [vmem:[%s2] sm:$0x1]
    %v500 = vperm.slane %v498, 0
    %v502 = vadd.f32 %v497, %v500
    %vm503 = vcmask 517120
    %504 = vst.msk [vmem:[#allocation2] sm:$0x3] %vm503, %v502
    // Predicated region
    $region14: #{tpu_custom_call.1} parent=1 // pred_check
      _
    $region15: #{tpu_custom_call.1} parent=1 // pred_check_branch
      %506 = sbr.rel (0) target = $region17
    $region16: #{tpu_custom_call.1} parent=1 // pred_region
      %508 = vsyncadd [#allocation3], 0
      %s510 = sshll.u32 [#allocation2], 4
      %s511 = int_to_ptr.vmem [resolvable:$true] %s510
      %s512 = sshll.u32 %s3, 4
      %s513 = int_to_ptr.hbm [resolvable:$true] %s512
      %515 = dma.vmem_to_hbm [thread:$0]  %s511, 32, %s513, [#allocation3]
    $region17: #{tpu_custom_call.1} parent=1 // pred_fallthru
      _
    // Predicated region
    $region18: #{tpu_custom_call.1} parent=1 // pred_check
      _
    $region19: #{tpu_custom_call.1} parent=1 // pred_check_branch
      %517 = sbr.rel (0) target = $region21
    $region20: #{tpu_custom_call.1} parent=1 // pred_region
      %519 = dma.done [#allocation3], 32
    $region21: #{tpu_custom_call.1} parent=1 // pred_fallthru
      _
    %520 = vsyncpa [#allocation3], 1

</llo_original>
